<compile_context>
chip_gen: v6e
topology: v6e:2x2x1
jax: 0.10.0
libtpu: 0.0.40
codegen_flags: <defaults>
</compile_context>

<pallas_src>
import numpy as np
import jax
import jax.numpy as jnp
from jax import lax
from jax.experimental import pallas as pl
from jax.experimental.pallas import tpu as pltpu


_NEG_MASK = -9e15     # same constant as the PyTorch module (-9000000000000000.0)
_NEG_CROSS = -1.8e16  # strictly more negative -> cross-graph softmax weights are exactly 0


def _tpu_kind():
    try:
        return jax.devices()[0].device_kind.lower()
    except Exception:
        return ""


def _select_tb(bn, nodes, f, hof, n_heads, row_cap=512):
    """Pick TB (graphs per grid step) and the VMEM limit to request.

    - grow TB until TB*Nodes reaches `row_cap` (>=256 rows fills the v6e/v7x
      MXU; the cap also bounds the quadratic (TBN, TBN) attention block),
    - v5e/v6e (1 TensorCore): largest divisor wins, a 1-step grid is fine,
    - v7x (2 TensorCores, 64 MiB VMEM): prefer an even number of >=2 steps,
    - respect a generation-aware VMEM budget.
    """
    kind = _tpu_kind()
    is_v7 = ("v7" in kind) or ("tpu7" in kind.replace(" ", ""))
    vmem_cap = (48 if is_v7 else 96) << 20

    def footprint(tb):
        tbn = tb * nodes
        dyn = 2 * tbn * (f + hof) * 4                             # double-buffered x / out
        const = 2 * (tbn * tbn + f * hof + 2 * n_heads * hof) * 4  # bias + params
        temps = (tbn * hof + 4 * tbn * tbn + 2 * n_heads * tbn) * 4
        return dyn + const + temps

    divisors = [d for d in range(1, bn + 1) if bn % d == 0]
    cands = [d for d in divisors
             if d * nodes <= row_cap
             and ((d * nodes) % 8 == 0 or bn // d == 1)            # (8,128) BlockSpec rule
             and footprint(d) <= int(vmem_cap * 0.85)]
    if not cands:
        cands = [1]
    tb = max(cands)
    if is_v7:
        pref = [d for d in cands if (bn // d) >= 2 and (bn // d) % 2 == 0]
        if pref:
            tb = max(pref)
    vmem_limit = vmem_cap if footprint(tb) > (24 << 20) else None
    return tb, vmem_limit


def _gat_kernel(*, alpha, n_heads, out_features):
    H, OF = n_heads, out_features

    def kernel(x_ref, bias_ref, w_ref, a1_ref, a2_ref, out_ref):
        # x_ref   : (TBN, F)        TB graphs' node features, stacked (TBN = TB*Nodes)
        # bias_ref: (TBN, TBN)      block-diag: where(adj>0, 0, -9e15) on-diag, -1.8e16 off-diag
        # w_ref   : (F, H*OF)       head-concatenated projection
        # a1_ref  : (H, H*OF)       row h holds a_h[:OF] at columns h*OF:(h+1)*OF (zeros elsewhere)
        # a2_ref  : (H, H*OF)       row h holds a_h[OF:] at columns h*OF:(h+1)*OF
        # out_ref : (TBN, H*OF)     head-concatenated output, final layout
        x = x_ref[...]
        # One fused projection matmul for all graphs and all heads.
        Wh = jnp.dot(x, w_ref[...], preferred_element_type=jnp.float32)     # (TBN, HOF)

        # i-term per head: col[:, h] = Wh[:, h*OF:(h+1)*OF] . a1_h
        col = lax.dot_general(Wh, a1_ref[...], (((1,), (1,)), ((), ())),
                              preferred_element_type=jnp.float32)            # (TBN, H)
        # j-term per head, lane layout: row[h, :] = Wh[:, h*OF:(h+1)*OF] . a2_h
        row = lax.dot_general(a2_ref[...], Wh, (((1,), (1,)), ((), ())),
                              preferred_element_type=jnp.float32)            # (H, TBN)

        bias = bias_ref[...]                                                 # (TBN, TBN)

        for h in range(H):                         # static unroll over heads only
            # Dense logits for all TB graphs at once (cross-graph entries are
            # killed exactly by the -1.8e16 bias after softmax).
            e = col[:, h:h + 1] + row[h:h + 1, :]                            # (TBN, TBN)
            e = jnp.where(e > 0, e, alpha * e)                               # LeakyReLU
            att = e + bias                         # == where(adj>0, e, -9e15) exactly
            att = att - jnp.max(att, axis=-1, keepdims=True)
            p = jnp.exp(att)
            att = p / jnp.sum(p, axis=-1, keepdims=True)
            hp = jnp.dot(att, Wh[:, h * OF:(h + 1) * OF],
                         preferred_element_type=jnp.float32)                 # (TBN, OF)
            hb = jnp.where(hp > 0, hp, jnp.exp(hp) - 1.0)                    # ELU (concat=True)
            out_ref[:, h * OF:(h + 1) * OF] = hb.astype(out_ref.dtype)       # direct store

    return kernel


def gat_forward(x, adj, W_all, a_all, alpha, *, row_cap=512):
    """
    x     : (B, N, Nodes, F)      float32
    adj   : (Nodes, Nodes)        float32 (broadcast over B, N like PyTorch)
    W_all : (H, F, OF)            per-head projection
    a_all : (H, OF, 2)            per-head attention params: [:, :, 0]=a1, [:, :, 1]=a2
    returns (B, N, Nodes, H*OF)   == torch.cat([head_i(x, adj)], dim=-1)
    """
    B, N, Nodes, F = x.shape
    H, Fw, OF = W_all.shape
    assert Fw == F
    HOF = H * OF
    BN = B * N

    TB, vmem_limit = _select_tb(BN, Nodes, F, HOF, H, row_cap=row_cap)
    TBN = TB * Nodes

    x_flat = x.reshape(BN * Nodes, F).astype(jnp.float32)

    # Head-fused parameters (built once, outside the kernel).
    W_cat = jnp.transpose(W_all, (1, 0, 2)).reshape(F, HOF).astype(jnp.float32)   # (F, H*OF)
    a1_blocks = jax.scipy.linalg.block_diag(
        *[a_all[h, :, 0][None, :] for h in range(H)]).astype(jnp.float32)          # (H, H*OF)
    a2_blocks = jax.scipy.linalg.block_diag(
        *[a_all[h, :, 1][None, :] for h in range(H)]).astype(jnp.float32)          # (H, H*OF)

    # Block-diagonal additive bias: exactly reproduces where(adj>0, e, -9e15)
    # within a graph; off-diagonal blocks are more negative so cross-graph
    # weights are exactly 0 even for all-isolated rows.
    inner_bias = jnp.where(adj > 0, 0.0, _NEG_MASK).astype(jnp.float32)            # (Nodes, Nodes)
    gid = jnp.arange(TBN) // Nodes
    same_graph = gid[:, None] == gid[None, :]
    big_bias = jnp.where(same_graph, jnp.tile(inner_bias, (TB, TB)),
                         jnp.float32(_NEG_CROSS))                                  # (TBN, TBN)

    kernel = _gat_kernel(alpha=float(alpha), n_heads=H, out_features=OF)

    out = pl.pallas_call(
        kernel,
        out_shape=jax.ShapeDtypeStruct((BN * Nodes, HOF), jnp.float32),
        grid_spec=pltpu.PrefetchScalarGridSpec(
            num_scalar_prefetch=0,
            grid=(BN // TB,),
            in_specs=[
                pl.BlockSpec((TBN, F), lambda g: (g, 0)),        # x (block index varies)
                pl.BlockSpec((TBN, TBN), lambda g: (0, 0)),      # bias (constant index)
                pl.BlockSpec((F, HOF), lambda g: (0, 0)),        # W    (constant index)
                pl.BlockSpec((H, HOF), lambda g: (0, 0)),        # a1   (constant index)
                pl.BlockSpec((H, HOF), lambda g: (0, 0)),        # a2   (constant index)
            ],
            out_specs=pl.BlockSpec((TBN, HOF), lambda g: (g, 0)),
        ),
        compiler_params=pltpu.CompilerParams(
            dimension_semantics=("parallel",),
            vmem_limit_bytes=vmem_limit),
    )(x_flat, big_bias, W_cat, a1_blocks, a2_blocks)

    # (BN*Nodes, H*OF) -> (B, N, Nodes, H*OF): free contiguous reshape.
    return out.reshape(B, N, Nodes, HOF)


def _xavier_uniform(key, shape, gain):
    fan_in, fan_out = shape[-2], shape[-1]
    limit = gain * np.sqrt(6.0 / (fan_in + fan_out))
    return jax.random.uniform(key, shape, jnp.float32, -limit, limit)


def _reference(x, adj, W_all, a_all, alpha):
    """Pure-JAX reference mirroring the PyTorch module (eval mode)."""
    hi = jax.lax.Precision.HIGHEST
    outs = []
    for h in range(W_all.shape[0]):
        Wh = jnp.einsum("bnif,fo->bnio", x, W_all[h], precision=hi)
        e = (jnp.einsum("bnio,o->bni", Wh, a_all[h, :, 0], precision=hi)[..., :, None]
             + jnp.einsum("bnjo,o->bnj", Wh, a_all[h, :, 1], precision=hi)[..., None, :])
        e = jnp.where(e > 0, e, alpha * e)
        att = jnp.where(adj > 0, e, -9e15)
        att = jax.nn.softmax(att, axis=-1)
        hp = jnp.einsum("bnij,bnjo->bnio", att, Wh, precision=hi)
        outs.append(jnp.where(hp > 0, hp, jnp.exp(hp) - 1.0))
    return jnp.concatenate(outs, axis=-1)


if __name__ == "__main__":
    # Small, module-consistent shapes.
    B, N, Nodes = 2, 2, 8
    n_feature, n_hid, n_heads = 16, 32, 2
    alpha = 0.2          # LeakyReLU negative slope
    # dropout = 0.5      # eval mode -> identity

    key = jax.random.PRNGKey(0)
    kx, kadj, kW, ka = jax.random.split(key, 4)

    x = jax.random.normal(kx, (B, N, Nodes, n_feature), jnp.float32)

    # Random symmetric-ish binary adjacency with self loops.
    adj = (jax.random.uniform(kadj, (Nodes, Nodes)) > 0.5).astype(jnp.float32)
    adj = jnp.maximum(adj, jnp.eye(Nodes, dtype=jnp.float32))

    # Per-head parameters, xavier_uniform with gain=1.414 (as in nn.init).
    Wkeys = jax.random.split(kW, n_heads)
    akeys = jax.random.split(ka, n_heads)
    W_all = jnp.stack([_xavier_uniform(Wkeys[i], (n_feature, n_hid), 1.414)
                       for i in range(n_heads)])                    # (H, F, OF)
    # a has PyTorch shape (2*OF, 1); store as (H, OF, 2): [:, :, 0]=a[:OF], [:, :, 1]=a[OF:]
    a_raw = [_xavier_uniform(akeys[i], (2 * n_hid, 1), 1.414) for i in range(n_heads)]
    a_all = jnp.stack([jnp.stack([a[:n_hid, 0], a[n_hid:, 0]], axis=-1)
                       for a in a_raw])                              # (H, OF, 2)

    out = gat_forward(x, adj, W_all, a_all, alpha)
    out = jax.block_until_ready(out)

    ref = _reference(x, adj, W_all, a_all, alpha)
    assert out.shape == (B, N, Nodes, n_heads * n_hid)
    np.testing.assert_allclose(np.asarray(out), np.asarray(ref), rtol=1e-5, atol=1e-5)

    print("KERNEL_OK")
</pallas_src>

<mosaic_0001>
module attributes {stable_mosaic.version = 11 : i64} {
  func.func @kernel(%arg0: i32, %arg1: memref<32x16xf32, #tpu.memory_space<vmem>>, %arg2: memref<32x32xf32, #tpu.memory_space<vmem>>, %arg3: memref<16x64xf32, #tpu.memory_space<vmem>>, %arg4: memref<2x64xf32, #tpu.memory_space<vmem>>, %arg5: memref<2x64xf32, #tpu.memory_space<vmem>>, %arg6: memref<32x64xf32, #tpu.memory_space<vmem>>) attributes {dimension_semantics = [#tpu.dimension_semantics<parallel>], iteration_bounds = array<i64: 1>, scalar_prefetch = 0 : i64, scratch_operands = 0 : i64, tpu.core_type = #tpu.core_type<tc>, window_params = [{transform_indices = @transform_0, window_bounds = array<i64: 32, 16>}, {pipeline_mode = #tpu.pipeline_mode<synchronous>, transform_indices = @transform_1, window_bounds = array<i64: 32, 32>}, {pipeline_mode = #tpu.pipeline_mode<synchronous>, transform_indices = @transform_2, window_bounds = array<i64: 16, 64>}, {pipeline_mode = #tpu.pipeline_mode<synchronous>, transform_indices = @transform_3, window_bounds = array<i64: 2, 64>}, {pipeline_mode = #tpu.pipeline_mode<synchronous>, transform_indices = @transform_4, window_bounds = array<i64: 2, 64>}, {transform_indices = @transform_5, window_bounds = array<i64: 32, 64>}]} {
    %c0 = arith.constant 0 : index
    %c0_0 = arith.constant 0 : index
    %0 = vector.load %arg1[%c0, %c0_0] : memref<32x16xf32, #tpu.memory_space<vmem>>, vector<32x16xf32>
    %c0_1 = arith.constant 0 : index
    %c0_2 = arith.constant 0 : index
    %1 = vector.load %arg3[%c0_1, %c0_2] : memref<16x64xf32, #tpu.memory_space<vmem>>, vector<16x64xf32>
    %cst = arith.constant dense<0.000000e+00> : vector<32x64xf32>
    %2 = tpu.matmul %0, %1, %cst {dimension_numbers = #tpu.dot_dimension_numbers<[1], [0], [0], [1], [0, 0, 1, 1], [], []>} : vector<32x16xf32>, vector<16x64xf32>, vector<32x64xf32> -> vector<32x64xf32>
    %c0_3 = arith.constant 0 : index
    %c0_4 = arith.constant 0 : index
    %3 = vector.load %arg4[%c0_3, %c0_4] : memref<2x64xf32, #tpu.memory_space<vmem>>, vector<2x64xf32>
    %cst_5 = arith.constant dense<0.000000e+00> : vector<32x2xf32>
    %4 = tpu.matmul %2, %3, %cst_5 {dimension_numbers = #tpu.dot_dimension_numbers<[1], [1], [0], [0], [0, 0, 1, 0], [], []>} : vector<32x64xf32>, vector<2x64xf32>, vector<32x2xf32> -> vector<32x2xf32>
    %c0_6 = arith.constant 0 : index
    %c0_7 = arith.constant 0 : index
    %5 = vector.load %arg5[%c0_6, %c0_7] : memref<2x64xf32, #tpu.memory_space<vmem>>, vector<2x64xf32>
    %cst_8 = arith.constant dense<0.000000e+00> : vector<2x32xf32>
    %6 = tpu.matmul %5, %2, %cst_8 {dimension_numbers = #tpu.dot_dimension_numbers<[1], [1], [0], [0], [0, 0, 1, 0], [], []>} : vector<2x64xf32>, vector<32x64xf32>, vector<2x32xf32> -> vector<2x32xf32>
    %c0_9 = arith.constant 0 : index
    %c0_10 = arith.constant 0 : index
    %7 = vector.load %arg2[%c0_9, %c0_10] : memref<32x32xf32, #tpu.memory_space<vmem>>, vector<32x32xf32>
    %8 = vector.extract_strided_slice %4 {offsets = [0, 0], sizes = [32, 1], strides = [1, 1]} : vector<32x2xf32> to vector<32x1xf32>
    %9 = vector.extract_strided_slice %6 {offsets = [0, 0], sizes = [1, 32], strides = [1, 1]} : vector<2x32xf32> to vector<1x32xf32>
    %10 = vector.broadcast %8 : vector<32x1xf32> to vector<32x32xf32>
    %11 = vector.broadcast %9 : vector<1x32xf32> to vector<32x32xf32>
    %12 = arith.addf %10, %11 : vector<32x32xf32>
    %cst_11 = arith.constant 0.000000e+00 : f32
    %13 = vector.broadcast %cst_11 : f32 to vector<32x32xf32>
    %14 = arith.cmpf ogt, %12, %13 : vector<32x32xf32>
    %cst_12 = arith.constant 2.000000e-01 : f32
    %15 = vector.broadcast %cst_12 : f32 to vector<32x32xf32>
    %16 = arith.mulf %15, %12 : vector<32x32xf32>
    %17 = arith.select %14, %12, %16 : vector<32x32xi1>, vector<32x32xf32>
    %18 = arith.addf %17, %7 : vector<32x32xf32>
    %cst_13 = arith.constant dense<0xFF800000> : vector<32xf32>
    %19 = vector.multi_reduction <maximumf>, %18, %cst_13 [1] : vector<32x32xf32> to vector<32xf32>
    %20 = vector.shape_cast %19 : vector<32xf32> to vector<32x1xf32>
    %21 = vector.broadcast %20 : vector<32x1xf32> to vector<32x32xf32>
    %22 = arith.subf %18, %21 : vector<32x32xf32>
    %23 = math.exp %22 : vector<32x32xf32>
    %cst_14 = arith.constant dense<0.000000e+00> : vector<32xf32>
    %24 = vector.multi_reduction <add>, %23, %cst_14 [1] : vector<32x32xf32> to vector<32xf32>
    %25 = vector.shape_cast %24 : vector<32xf32> to vector<32x1xf32>
    %26 = vector.broadcast %25 : vector<32x1xf32> to vector<32x32xf32>
    %27 = arith.divf %23, %26 : vector<32x32xf32>
    %28 = vector.extract_strided_slice %2 {offsets = [0, 0], sizes = [32, 32], strides = [1, 1]} : vector<32x64xf32> to vector<32x32xf32>
    %cst_15 = arith.constant dense<0.000000e+00> : vector<32x32xf32>
    %29 = tpu.matmul %27, %28, %cst_15 {dimension_numbers = #tpu.dot_dimension_numbers<[1], [0], [0], [1], [0, 0, 1, 1], [], []>} : vector<32x32xf32>, vector<32x32xf32>, vector<32x32xf32> -> vector<32x32xf32>
    %cst_16 = arith.constant 0.000000e+00 : f32
    %30 = vector.broadcast %cst_16 : f32 to vector<32x32xf32>
    %31 = arith.cmpf ogt, %29, %30 : vector<32x32xf32>
    %32 = math.exp %29 : vector<32x32xf32>
    %cst_17 = arith.constant 1.000000e+00 : f32
    %33 = vector.broadcast %cst_17 : f32 to vector<32x32xf32>
    %34 = arith.subf %32, %33 : vector<32x32xf32>
    %35 = arith.select %31, %29, %34 : vector<32x32xi1>, vector<32x32xf32>
    %c0_18 = arith.constant 0 : index
    %c0_19 = arith.constant 0 : index
    %36 = vector.load %arg6[%c0_18, %c0_19] : memref<32x64xf32, #tpu.memory_space<vmem>>, vector<32x32xf32>
    tpu.vector_store %arg6[%c0_18, %c0_19], %35 {strides = array<i32>} : memref<32x64xf32, #tpu.memory_space<vmem>>, vector<32x32xf32>,
    %37 = vector.extract_strided_slice %4 {offsets = [0, 1], sizes = [32, 1], strides = [1, 1]} : vector<32x2xf32> to vector<32x1xf32>
    %38 = vector.extract_strided_slice %6 {offsets = [1, 0], sizes = [1, 32], strides = [1, 1]} : vector<2x32xf32> to vector<1x32xf32>
    %39 = vector.broadcast %37 : vector<32x1xf32> to vector<32x32xf32>
    %40 = vector.broadcast %38 : vector<1x32xf32> to vector<32x32xf32>
    %41 = arith.addf %39, %40 : vector<32x32xf32>
    %cst_20 = arith.constant 0.000000e+00 : f32
    %42 = vector.broadcast %cst_20 : f32 to vector<32x32xf32>
    %43 = arith.cmpf ogt, %41, %42 : vector<32x32xf32>
    %cst_21 = arith.constant 2.000000e-01 : f32
    %44 = vector.broadcast %cst_21 : f32 to vector<32x32xf32>
    %45 = arith.mulf %44, %41 : vector<32x32xf32>
    %46 = arith.select %43, %41, %45 : vector<32x32xi1>, vector<32x32xf32>
    %47 = arith.addf %46, %7 : vector<32x32xf32>
    %cst_22 = arith.constant dense<0xFF800000> : vector<32xf32>
    %48 = vector.multi_reduction <maximumf>, %47, %cst_22 [1] : vector<32x32xf32> to vector<32xf32>
    %49 = vector.shape_cast %48 : vector<32xf32> to vector<32x1xf32>
    %50 = vector.broadcast %49 : vector<32x1xf32> to vector<32x32xf32>
    %51 = arith.subf %47, %50 : vector<32x32xf32>
    %52 = math.exp %51 : vector<32x32xf32>
    %cst_23 = arith.constant dense<0.000000e+00> : vector<32xf32>
    %53 = vector.multi_reduction <add>, %52, %cst_23 [1] : vector<32x32xf32> to vector<32xf32>
    %54 = vector.shape_cast %53 : vector<32xf32> to vector<32x1xf32>
    %55 = vector.broadcast %54 : vector<32x1xf32> to vector<32x32xf32>
    %56 = arith.divf %52, %55 : vector<32x32xf32>
    %57 = vector.extract_strided_slice %2 {offsets = [0, 32], sizes = [32, 32], strides = [1, 1]} : vector<32x64xf32> to vector<32x32xf32>
    %cst_24 = arith.constant dense<0.000000e+00> : vector<32x32xf32>
    %58 = tpu.matmul %56, %57, %cst_24 {dimension_numbers = #tpu.dot_dimension_numbers<[1], [0], [0], [1], [0, 0, 1, 1], [], []>} : vector<32x32xf32>, vector<32x32xf32>, vector<32x32xf32> -> vector<32x32xf32>
    %cst_25 = arith.constant 0.000000e+00 : f32
    %59 = vector.broadcast %cst_25 : f32 to vector<32x32xf32>
    %60 = arith.cmpf ogt, %58, %59 : vector<32x32xf32>
    %61 = math.exp %58 : vector<32x32xf32>
    %cst_26 = arith.constant 1.000000e+00 : f32
    %62 = vector.broadcast %cst_26 : f32 to vector<32x32xf32>
    %63 = arith.subf %61, %62 : vector<32x32xf32>
    %64 = arith.select %60, %58, %63 : vector<32x32xi1>, vector<32x32xf32>
    %c0_27 = arith.constant 0 : index
    %c32 = arith.constant 32 : index
    %65 = vector.load %arg6[%c0_27, %c32] : memref<32x64xf32, #tpu.memory_space<vmem>>, vector<32x32xf32>
    tpu.vector_store %arg6[%c0_27, %c32], %64 {strides = array<i32>} : memref<32x64xf32, #tpu.memory_space<vmem>>, vector<32x32xf32>,
    return
  }
  func.func @transform_0(%arg0: i32) -> (i32, i32) {
    %c0_i32 = arith.constant 0 : i32
    %c0_i32_0 = arith.constant 0 : i32
    return %arg0, %c0_i32 : i32, i32
  }
  func.func @transform_1(%arg0: i32) -> (i32, i32) {
    %c0_i32 = arith.constant 0 : i32
    %c0_i32_0 = arith.constant 0 : i32
    %c0_i32_1 = arith.constant 0 : i32
    return %c0_i32, %c0_i32_0 : i32, i32
  }
  func.func @transform_2(%arg0: i32) -> (i32, i32) {
    %c0_i32 = arith.constant 0 : i32
    %c0_i32_0 = arith.constant 0 : i32
    %c0_i32_1 = arith.constant 0 : i32
    return %c0_i32, %c0_i32_0 : i32, i32
  }
  func.func @transform_3(%arg0: i32) -> (i32, i32) {
    %c0_i32 = arith.constant 0 : i32
    %c0_i32_0 = arith.constant 0 : i32
    %c0_i32_1 = arith.constant 0 : i32
    return %c0_i32, %c0_i32_0 : i32, i32
  }
  func.func @transform_4(%arg0: i32) -> (i32, i32) {
    %c0_i32 = arith.constant 0 : i32
    %c0_i32_0 = arith.constant 0 : i32
    %c0_i32_1 = arith.constant 0 : i32
    return %c0_i32, %c0_i32_0 : i32, i32
  }
  func.func @transform_5(%arg0: i32) -> (i32, i32) {
    %c0_i32 = arith.constant 0 : i32
    %c0_i32_0 = arith.constant 0 : i32
    return %arg0, %c0_i32 : i32, i32
  }
}

</mosaic_0001>

<llo_original>
// kernel: tpu_custom_call.1
$region0: #{tpu_custom_call.1}
  #allocation0 [shape = 'u32[]', space=smem, size = 0x4, offset = 0x4, fixed_abs, tag = 'smem constant byte address 0x4 - core index']
  #allocation1 [shape = 'u32[144,128]{1,0:T(1,128)}', space=vmem, size = 0x12000, scoped, tag = 'internal scratch']
  %s0 = inlined_call_operand.vmem [shape: f32[32,16], index: 0, kind: input, shape index: {}]
  %s1 = inlined_call_operand.vmem [shape: f32[32,32], index: 1, kind: input, shape index: {}]
  %s2 = inlined_call_operand.vmem [shape: f32[16,64], index: 2, kind: input, shape index: {}]
  %s3 = inlined_call_operand.vmem [shape: f32[2,64], index: 3, kind: input, shape index: {}]
  %s4 = inlined_call_operand.vmem [shape: f32[2,64], index: 4, kind: input, shape index: {}]
  %s5 = inlined_call_operand.hbm [shape: f32[32,64], index: 5, kind: output, shape index: {}]
  %s6 = sld [smem:[#allocation0]]
  $region30: #{tpu_custom_call.1} parent=0
    _
  %s8 = ssub.s32 1, %s6
  %s9 = scalar_select 0, %s8, %s6
  $region1: #{tpu_custom_call.1} parent=0
    #allocation2 [shape = 'u8[16384]{0}', space=vmem, size = 0x4000, scoped, tag = 'output window, operand 0, single buffered']
    #allocation3 [shape = 's32[1]{0}', space=sflag, size = 0x4, scoped, tag = 'scoped memory for tpu_custom_call.1']
    %10 = vsyncpa [#allocation3], 0
    // Predicated region
    $region2: #{tpu_custom_call.1} parent=1 // pred_check
      _
    $region3: #{tpu_custom_call.1} parent=1 // pred_check_branch
      %12 = sbr.rel (0) target = $region5
    $region4: #{tpu_custom_call.1} parent=1 // pred_region
      _
    $region5: #{tpu_custom_call.1} parent=1 // pred_fallthru
      _
    // Predicated region
    $region6: #{tpu_custom_call.1} parent=1 // pred_check
      _
    $region7: #{tpu_custom_call.1} parent=1 // pred_check_branch
      %14 = sbr.rel (0) target = $region9
    $region8: #{tpu_custom_call.1} parent=1 // pred_region
      _
    $region9: #{tpu_custom_call.1} parent=1 // pred_fallthru
      _
    // Predicated region
    $region10: #{tpu_custom_call.1} parent=1 // pred_check
      _
    $region11: #{tpu_custom_call.1} parent=1 // pred_check_branch
      %16 = sbr.rel (0) target = $region13
    $region12: #{tpu_custom_call.1} parent=1 // pred_region
      _
    $region13: #{tpu_custom_call.1} parent=1 // pred_fallthru
      _
    // Predicated region
    $region14: #{tpu_custom_call.1} parent=1 // pred_check
      _
    $region15: #{tpu_custom_call.1} parent=1 // pred_check_branch
      %18 = sbr.rel (0) target = $region17
    $region16: #{tpu_custom_call.1} parent=1 // pred_region
      _
    $region17: #{tpu_custom_call.1} parent=1 // pred_fallthru
      _
    // Predicated region
    $region18: #{tpu_custom_call.1} parent=1 // pred_check
      _
    $region19: #{tpu_custom_call.1} parent=1 // pred_check_branch
      %20 = sbr.rel (0) target = $region21
    $region20: #{tpu_custom_call.1} parent=1 // pred_region
      _
    $region21: #{tpu_custom_call.1} parent=1 // pred_fallthru
      _
    %v21 = vld [vmem:[%s0] sm:$0xff]
    %v22 = vld [vmem:[%s0 + $0x8] sm:$0xff]
    %v23 = vld [vmem:[%s0 + $0x10] sm:$0xff]
    %v24 = vld [vmem:[%s0 + $0x18] sm:$0xff]
    %v25 = vld [vmem:[%s2] sm:$0xff]
    %v26 = vld [vmem:[%s2 + $0x8] sm:$0xff]
    %vm27 = vcmask 130048
    %v29 = vsel %vm27, %v21, 0
    %v32 = vsel %vm27, %v22, 0
    %v35 = vsel %vm27, %v23, 0
    %v38 = vsel %vm27, %v24, 0
    %40 = vmatprep.subr.mxu0 0.0
    %41 = vmatpush1.msra.mxu0 0.0
    %42 = vmatprep.subr.mxu0 0.0
    %43 = vmatpush1.msra.mxu0 0.0
    %44 = vmatprep.subr.mxu0 0.0
    %45 = vmatpush1.msra.mxu0 0.0
    %46 = vmatprep.subr.mxu0 0.0
    %47 = vmatpush1.msra.mxu0 0.0
    %48 = vmatprep.subr.mxu0 0.0
    %49 = vmatpush1.msra.mxu0 0.0
    %50 = vmatprep.subr.mxu0 0.0
    %51 = vmatpush1.msra.mxu0 0.0
    %52 = vmatprep.subr.mxu0 0.0
    %53 = vmatpush1.msra.mxu0 0.0
    %54 = vmatprep.subr.mxu0 0.0
    %55 = vmatpush1.msra.mxu0 0.0
    %56 = vmatprep.subr.mxu0 0.0
    %57 = vmatpush1.msra.mxu0 0.0
    %58 = vmatprep.subr.mxu0 0.0
    %59 = vmatpush1.msra.mxu0 0.0
    %60 = vmatprep.subr.mxu0 0.0
    %61 = vmatpush1.msra.mxu0 0.0
    %62 = vmatprep.subr.mxu0 0.0
    %63 = vmatpush1.msra.mxu0 0.0
    %64 = vmatprep.subr.mxu0 0.0
    %65 = vmatpush1.msra.mxu0 0.0
    %66 = vmatprep.subr.mxu0 0.0
    %67 = vmatpush1.msra.mxu0 0.0
    %68 = vmatprep.subr.mxu0 0.0
    %69 = vmatpush1.msra.mxu0 %v26
    %70 = vmatprep.subr.mxu0 0.0
    %71 = vmatpush1.msra.mxu0 %v25
    %72 = vmatprep.subr.mxu0 0.0
    %73 = vmatpush2.msra.mxu0 0.0
    %74 = vmatprep.subr.mxu0 0.0
    %75 = vmatpush2.msra.mxu0 0.0
    %76 = vmatprep.subr.mxu0 0.0
    %77 = vmatpush2.msra.mxu0 0.0
    %78 = vmatprep.subr.mxu0 0.0
    %79 = vmatpush2.msra.mxu0 0.0
    %80 = vmatprep.subr.mxu0 0.0
    %81 = vmatpush2.msra.mxu0 0.0
    %82 = vmatprep.subr.mxu0 0.0
    %83 = vmatpush2.msra.mxu0 0.0
    %84 = vmatprep.subr.mxu0 0.0
    %85 = vmatpush2.msra.mxu0 0.0
    %86 = vmatprep.subr.mxu0 0.0
    %87 = vmatpush2.msra.mxu0 0.0
    %88 = vmatprep.subr.mxu0 0.0
    %89 = vmatpush2.msra.mxu0 0.0
    %90 = vmatprep.subr.mxu0 0.0
    %91 = vmatpush2.msra.mxu0 0.0
    %92 = vmatprep.subr.mxu0 0.0
    %93 = vmatpush2.msra.mxu0 0.0
    %94 = vmatprep.subr.mxu0 0.0
    %95 = vmatpush2.msra.mxu0 0.0
    %96 = vmatprep.subr.mxu0 0.0
    %97 = vmatpush2.msra.mxu0 0.0
    %98 = vmatprep.subr.mxu0 0.0
    %99 = vmatpush2.msra.mxu0 0.0
    %100 = vmatprep.subr.mxu0 0.0
    %101 = vmatpush2.msra.mxu0 0.0
    %102 = vmatprep.subr.mxu0 0.0
    %103 = vmatpush2.msra.mxu0 0.0
    %104 = vmatprep.mubr.f32.mxu0 0.0
    %105 = vmatmul.mubr.f32.gmra.mxu0 %v29
    %v106 = vpop.f32.mrf.mxu0
    %v107 = vadd.f32 0.0, %v106
    %v108 = vpop.f32.mrf.mxu0
    %109 = vmatprep.mubr.f32.mxu0 0.0
    %110 = vmatmul.mubr.f32.gmra.mxu0 %v32
    %v111 = vpop.f32.mrf.mxu0
    %v112 = vadd.f32 0.0, %v111
    %v113 = vpop.f32.mrf.mxu0
    %114 = vmatprep.mubr.f32.mxu0 0.0
    %115 = vmatmul.mubr.f32.gmra.mxu0 %v35
    %v116 = vpop.f32.mrf.mxu0
    %v117 = vadd.f32 0.0, %v116
    %v118 = vpop.f32.mrf.mxu0
    %119 = vmatprep.mubr.f32.mxu0 0.0
    %120 = vmatmul.mubr.f32.gmra.mxu0 %v38
    %v121 = vpop.f32.mrf.mxu0
    %v122 = vadd.f32 0.0, %v121
    %v123 = vpop.f32.mrf.mxu0
    %124 = vdwg.mxu0
    %v125 = vld [vmem:[%s3] sm:$0x3]
    %vm126 = vcmask 523264
    %v128 = vsel %vm126, %v107, 0
    %v131 = vsel %vm126, %v112, 0
    %v134 = vsel %vm126, %v117, 0
    %v137 = vsel %vm126, %v122, 0
    %v140 = vsel %vm126, %v125, 0
    %142 = vmatprep.subr.mxu0 0.0
    %143 = vmatpush1.xpose.msra.mxu0 0.0
    %144 = vmatprep.subr.mxu0 0.0
    %145 = vmatpush1.xpose.msra.mxu0 0.0
    %146 = vmatprep.subr.mxu0 0.0
    %147 = vmatpush1.xpose.msra.mxu0 0.0
    %148 = vmatprep.subr.mxu0 0.0
    %149 = vmatpush1.xpose.msra.mxu0 0.0
    %150 = vmatprep.subr.mxu0 0.0
    %151 = vmatpush1.xpose.msra.mxu0 0.0
    %152 = vmatprep.subr.mxu0 0.0
    %153 = vmatpush1.xpose.msra.mxu0 0.0
    %154 = vmatprep.subr.mxu0 0.0
    %155 = vmatpush1.xpose.msra.mxu0 0.0
    %156 = vmatprep.subr.mxu0 0.0
    %157 = vmatpush1.xpose.msra.mxu0 0.0
    %158 = vmatprep.subr.mxu0 0.0
    %159 = vmatpush1.xpose.msra.mxu0 0.0
    %160 = vmatprep.subr.mxu0 0.0
    %161 = vmatpush1.xpose.msra.mxu0 0.0
    %162 = vmatprep.subr.mxu0 0.0
    %163 = vmatpush1.xpose.msra.mxu0 0.0
    %164 = vmatprep.subr.mxu0 0.0
    %165 = vmatpush1.xpose.msra.mxu0 0.0
    %166 = vmatprep.subr.mxu0 0.0
    %167 = vmatpush1.xpose.msra.mxu0 0.0
    %168 = vmatprep.subr.mxu0 0.0
    %169 = vmatpush1.xpose.msra.mxu0 0.0
    %170 = vmatprep.subr.mxu0 0.0
    %171 = vmatpush1.xpose.msra.mxu0 0.0
    %172 = vmatprep.subr.mxu0 0.0
    %173 = vmatpush1.xpose.msra.mxu0 %v140
    %174 = vmatprep.subr.mxu0 0.0
    %175 = vmatpush2.xpose.msra.mxu0 0.0
    %176 = vmatprep.subr.mxu0 0.0
    %177 = vmatpush2.xpose.msra.mxu0 0.0
    %178 = vmatprep.subr.mxu0 0.0
    %179 = vmatpush2.xpose.msra.mxu0 0.0
    %180 = vmatprep.subr.mxu0 0.0
    %181 = vmatpush2.xpose.msra.mxu0 0.0
    %182 = vmatprep.subr.mxu0 0.0
    %183 = vmatpush2.xpose.msra.mxu0 0.0
    %184 = vmatprep.subr.mxu0 0.0
    %185 = vmatpush2.xpose.msra.mxu0 0.0
    %186 = vmatprep.subr.mxu0 0.0
    %187 = vmatpush2.xpose.msra.mxu0 0.0
    %188 = vmatprep.subr.mxu0 0.0
    %189 = vmatpush2.xpose.msra.mxu0 0.0
    %190 = vmatprep.subr.mxu0 0.0
    %191 = vmatpush2.xpose.msra.mxu0 0.0
    %192 = vmatprep.subr.mxu0 0.0
    %193 = vmatpush2.xpose.msra.mxu0 0.0
    %194 = vmatprep.subr.mxu0 0.0
    %195 = vmatpush2.xpose.msra.mxu0 0.0
    %196 = vmatprep.subr.mxu0 0.0
    %197 = vmatpush2.xpose.msra.mxu0 0.0
    %198 = vmatprep.subr.mxu0 0.0
    %199 = vmatpush2.xpose.msra.mxu0 0.0
    %200 = vmatprep.subr.mxu0 0.0
    %201 = vmatpush2.xpose.msra.mxu0 0.0
    %202 = vmatprep.subr.mxu0 0.0
    %203 = vmatpush2.xpose.msra.mxu0 0.0
    %204 = vmatprep.subr.mxu0 0.0
    %205 = vmatpush2.xpose.msra.mxu0 0.0
    %206 = vmatprep.mubr.f32.mxu0 0.0
    %207 = vmatmul.mubr.f32.gmra.mxu0 %v128
    %v208 = vpop.f32.mrf.mxu0
    %v209 = vadd.f32 0.0, %v208
    %v210 = vpop.f32.mrf.mxu0
    %211 = vmatprep.mubr.f32.mxu0 0.0
    %212 = vmatmul.mubr.f32.gmra.mxu0 %v131
    %v213 = vpop.f32.mrf.mxu0
    %v214 = vadd.f32 0.0, %v213
    %v215 = vpop.f32.mrf.mxu0
    %216 = vmatprep.mubr.f32.mxu0 0.0
    %217 = vmatmul.mubr.f32.gmra.mxu0 %v134
    %v218 = vpop.f32.mrf.mxu0
    %v219 = vadd.f32 0.0, %v218
    %v220 = vpop.f32.mrf.mxu0
    %221 = vmatprep.mubr.f32.mxu0 0.0
    %222 = vmatmul.mubr.f32.gmra.mxu0 %v137
    %v223 = vpop.f32.mrf.mxu0
    %v224 = vadd.f32 0.0, %v223
    %v225 = vpop.f32.mrf.mxu0
    %226 = vdwg.mxu0
    %v227 = vld [vmem:[%s4] sm:$0x3]
    %v229 = vsel %vm126, %v227, 0
    %231 = vmatprep.subr.mxu0 0.0
    %232 = vmatpush1.xpose.msra.mxu0 0.0
    %233 = vmatprep.subr.mxu0 0.0
    %234 = vmatpush1.xpose.msra.mxu0 0.0
    %235 = vmatprep.subr.mxu0 0.0
    %236 = vmatpush1.xpose.msra.mxu0 0.0
    %237 = vmatprep.subr.mxu0 0.0
    %238 = vmatpush1.xpose.msra.mxu0 0.0
    %239 = vmatprep.subr.mxu0 0.0
    %240 = vmatpush1.xpose.msra.mxu0 0.0
    %241 = vmatprep.subr.mxu0 0.0
    %242 = vmatpush1.xpose.msra.mxu0 0.0
    %243 = vmatprep.subr.mxu0 0.0
    %244 = vmatpush1.xpose.msra.mxu0 0.0
    %245 = vmatprep.subr.mxu0 0.0
    %246 = vmatpush1.xpose.msra.mxu0 0.0
    %247 = vmatprep.subr.mxu0 0.0
    %248 = vmatpush1.xpose.msra.mxu0 0.0
    %249 = vmatprep.subr.mxu0 0.0
    %250 = vmatpush1.xpose.msra.mxu0 0.0
    %251 = vmatprep.subr.mxu0 0.0
    %252 = vmatpush1.xpose.msra.mxu0 0.0
    %253 = vmatprep.subr.mxu0 0.0
    %254 = vmatpush1.xpose.msra.mxu0 0.0
    %255 = vmatprep.subr.mxu0 0.0
    %256 = vmatpush1.xpose.msra.mxu0 %v137
    %257 = vmatprep.subr.mxu0 0.0
    %258 = vmatpush1.xpose.msra.mxu0 %v134
    %259 = vmatprep.subr.mxu0 0.0
    %260 = vmatpush1.xpose.msra.mxu0 %v131
    %261 = vmatprep.subr.mxu0 0.0
    %262 = vmatpush1.xpose.msra.mxu0 %v128
    %263 = vmatprep.subr.mxu0 0.0
    %264 = vmatpush2.xpose.msra.mxu0 0.0
    %265 = vmatprep.subr.mxu0 0.0
    %266 = vmatpush2.xpose.msra.mxu0 0.0
    %267 = vmatprep.subr.mxu0 0.0
    %268 = vmatpush2.xpose.msra.mxu0 0.0
    %269 = vmatprep.subr.mxu0 0.0
    %270 = vmatpush2.xpose.msra.mxu0 0.0
    %271 = vmatprep.subr.mxu0 0.0
    %272 = vmatpush2.xpose.msra.mxu0 0.0
    %273 = vmatprep.subr.mxu0 0.0
    %274 = vmatpush2.xpose.msra.mxu0 0.0
    %275 = vmatprep.subr.mxu0 0.0
    %276 = vmatpush2.xpose.msra.mxu0 0.0
    %277 = vmatprep.subr.mxu0 0.0
    %278 = vmatpush2.xpose.msra.mxu0 0.0
    %279 = vmatprep.subr.mxu0 0.0
    %280 = vmatpush2.xpose.msra.mxu0 0.0
    %281 = vmatprep.subr.mxu0 0.0
    %282 = vmatpush2.xpose.msra.mxu0 0.0
    %283 = vmatprep.subr.mxu0 0.0
    %284 = vmatpush2.xpose.msra.mxu0 0.0
    %285 = vmatprep.subr.mxu0 0.0
    %286 = vmatpush2.xpose.msra.mxu0 0.0
    %287 = vmatprep.subr.mxu0 0.0
    %288 = vmatpush2.xpose.msra.mxu0 0.0
    %289 = vmatprep.subr.mxu0 0.0
    %290 = vmatpush2.xpose.msra.mxu0 0.0
    %291 = vmatprep.subr.mxu0 0.0
    %292 = vmatpush2.xpose.msra.mxu0 0.0
    %293 = vmatprep.subr.mxu0 0.0
    %294 = vmatpush2.xpose.msra.mxu0 0.0
    %295 = vmatprep.mubr.f32.mxu0 0.0
    %296 = vmatmul.mubr.f32.gmra.mxu0 %v229
    %v297 = vpop.f32.mrf.mxu0
    %v298 = vadd.f32 0.0, %v297
    %v299 = vpop.f32.mrf.mxu0
    %300 = vdwg.mxu0
    %v301 = vld [vmem:[%s1] sm:$0xff]
    %v302 = vld [vmem:[%s1 + $0x8] sm:$0xff]
    %v303 = vld [vmem:[%s1 + $0x10] sm:$0xff]
    %v304 = vld [vmem:[%s1 + $0x18] sm:$0xff]
    %306 = vset.pattern.permute.xlu0 0
    %307 = vperm.xlu0 %306, %v209
    %v308 = vpop.permute.xlu0 %307
    %311 = vset.pattern.permute.xlu0 0
    %312 = vperm.xlu0 %311, %v214
    %v313 = vpop.permute.xlu0 %312
    %316 = vset.pattern.permute.xlu0 0
    %317 = vperm.xlu0 %316, %v219
    %v318 = vpop.permute.xlu0 %317
    %321 = vset.pattern.permute.xlu0 0
    %322 = vperm.xlu0 %321, %v224
    %v323 = vpop.permute.xlu0 %322
    %v325 = vlaneseq
    %v326 = vshrl.u32 %v325, 7
    %v327 = vsub.s32 0, %v326
    %v328 = vrot.slane %v298, %v327
    %v329 = vadd.f32 %v308, %v328
    %v330 = vadd.f32 %v313, %v328
    %v331 = vadd.f32 %v318, %v328
    %v332 = vadd.f32 %v323, %v328
    %vm333 = vcmp.gt.f32.partialorder %v329, 0.0
    %vm334 = vcmp.gt.f32.partialorder %v330, 0.0
    %vm335 = vcmp.gt.f32.partialorder %v331, 0.0
    %vm336 = vcmp.gt.f32.partialorder %v332, 0.0
    %v337 = vmul.f32 %v329, 0.2
    %v338 = vmul.f32 %v330, 0.2
    %v339 = vmul.f32 %v331, 0.2
    %v340 = vmul.f32 %v332, 0.2
    %v341 = vsel %vm333, %v329, %v337
    %v342 = vsel %vm334, %v330, %v338
    %v343 = vsel %vm335, %v331, %v339
    %v344 = vsel %vm336, %v332, %v340
    %v345 = vadd.f32 %v341, %v301
    %v346 = vadd.f32 %v342, %v302
    %v347 = vadd.f32 %v343, %v303
    %v348 = vadd.f32 %v344, %v304
    %vm349 = vcmask 261120
    %v350 = vsel %vm349, %v345, -inf
    %351 = vmax.xlane.f32.xlu0 %v350
    %v352 = vpop.xlane.xlu0 %351
    %v353 = vsel %vm349, %v346, -inf
    %354 = vmax.xlane.f32.xlu0 %v353
    %v355 = vpop.xlane.xlu0 %354
    %v356 = vsel %vm349, %v347, -inf
    %357 = vmax.xlane.f32.xlu0 %v356
    %v358 = vpop.xlane.xlu0 %357
    %v359 = vsel %vm349, %v348, -inf
    %360 = vmax.xlane.f32.xlu0 %v359
    %v361 = vpop.xlane.xlu0 %360
    %v362 = vsub.f32 %v345, %v352
    %v363 = vsub.f32 %v346, %v355
    %v364 = vsub.f32 %v347, %v358
    %v365 = vsub.f32 %v348, %v361
    %v366 = vmul.f32 %v362, 1.442695
    %v367 = vpow.pop %v366
    %v368 = vmul.f32 %v363, 1.442695
    %v369 = vpow.pop %v368
    %v370 = vmul.f32 %v364, 1.442695
    %v371 = vpow.pop %v370
    %v372 = vmul.f32 %v365, 1.442695
    %v373 = vpow.pop %v372
    %v374 = vsel %vm349, %v367, 0.0
    %375 = vadd.xlane.f32.xlu0 %v374
    %v376 = vpop.xlane.xlu0 %375
    %v377 = vsel %vm349, %v369, 0.0
    %378 = vadd.xlane.f32.xlu0 %v377
    %v379 = vpop.xlane.xlu0 %378
    %v380 = vsel %vm349, %v371, 0.0
    %381 = vadd.xlane.f32.xlu0 %v380
    %v382 = vpop.xlane.xlu0 %381
    %v383 = vsel %vm349, %v373, 0.0
    %384 = vadd.xlane.f32.xlu0 %v383
    %v385 = vpop.xlane.xlu0 %384
    %v386 = vrcp.pop %v376
    %v387 = vmul.f32 %v367, %v386
    %v388 = vrcp.pop %v379
    %v389 = vmul.f32 %v369, %v388
    %v390 = vrcp.pop %v382
    %v391 = vmul.f32 %v371, %v390
    %v392 = vrcp.pop %v385
    %v393 = vmul.f32 %v373, %v392
    %v395 = vsel %vm349, %v387, 0
    %v398 = vsel %vm349, %v389, 0
    %v401 = vsel %vm349, %v391, 0
    %v404 = vsel %vm349, %v393, 0
    %406 = vmatprep.subr.mxu0 0.0
    %407 = vmatpush1.msra.mxu0 0.0
    %408 = vmatprep.subr.mxu0 0.0
    %409 = vmatpush1.msra.mxu0 0.0
    %410 = vmatprep.subr.mxu0 0.0
    %411 = vmatpush1.msra.mxu0 0.0
    %412 = vmatprep.subr.mxu0 0.0
    %413 = vmatpush1.msra.mxu0 0.0
    %414 = vmatprep.subr.mxu0 0.0
    %415 = vmatpush1.msra.mxu0 0.0
    %416 = vmatprep.subr.mxu0 0.0
    %417 = vmatpush1.msra.mxu0 0.0
    %418 = vmatprep.subr.mxu0 0.0
    %419 = vmatpush1.msra.mxu0 0.0
    %420 = vmatprep.subr.mxu0 0.0
    %421 = vmatpush1.msra.mxu0 0.0
    %422 = vmatprep.subr.mxu0 0.0
    %423 = vmatpush1.msra.mxu0 0.0
    %424 = vmatprep.subr.mxu0 0.0
    %425 = vmatpush1.msra.mxu0 0.0
    %426 = vmatprep.subr.mxu0 0.0
    %427 = vmatpush1.msra.mxu0 0.0
    %428 = vmatprep.subr.mxu0 0.0
    %429 = vmatpush1.msra.mxu0 0.0
    %430 = vmatprep.subr.mxu0 0.0
    %431 = vmatpush1.msra.mxu0 %v122
    %432 = vmatprep.subr.mxu0 0.0
    %433 = vmatpush1.msra.mxu0 %v117
    %434 = vmatprep.subr.mxu0 0.0
    %435 = vmatpush1.msra.mxu0 %v112
    %436 = vmatprep.subr.mxu0 0.0
    %437 = vmatpush1.msra.mxu0 %v107
    %438 = vmatprep.subr.mxu0 0.0
    %439 = vmatpush2.msra.mxu0 0.0
    %440 = vmatprep.subr.mxu0 0.0
    %441 = vmatpush2.msra.mxu0 0.0
    %442 = vmatprep.subr.mxu0 0.0
    %443 = vmatpush2.msra.mxu0 0.0
    %444 = vmatprep.subr.mxu0 0.0
    %445 = vmatpush2.msra.mxu0 0.0
    %446 = vmatprep.subr.mxu0 0.0
    %447 = vmatpush2.msra.mxu0 0.0
    %448 = vmatprep.subr.mxu0 0.0
    %449 = vmatpush2.msra.mxu0 0.0
    %450 = vmatprep.subr.mxu0 0.0
    %451 = vmatpush2.msra.mxu0 0.0
    %452 = vmatprep.subr.mxu0 0.0
    %453 = vmatpush2.msra.mxu0 0.0
    %454 = vmatprep.subr.mxu0 0.0
    %455 = vmatpush2.msra.mxu0 0.0
    %456 = vmatprep.subr.mxu0 0.0
    %457 = vmatpush2.msra.mxu0 0.0
    %458 = vmatprep.subr.mxu0 0.0
    %459 = vmatpush2.msra.mxu0 0.0
    %460 = vmatprep.subr.mxu0 0.0
    %461 = vmatpush2.msra.mxu0 0.0
    %462 = vmatprep.subr.mxu0 0.0
    %463 = vmatpush2.msra.mxu0 0.0
    %464 = vmatprep.subr.mxu0 0.0
    %465 = vmatpush2.msra.mxu0 0.0
    %466 = vmatprep.subr.mxu0 0.0
    %467 = vmatpush2.msra.mxu0 0.0
    %468 = vmatprep.subr.mxu0 0.0
    %469 = vmatpush2.msra.mxu0 0.0
    %470 = vmatprep.mubr.f32.mxu0 0.0
    %471 = vmatmul.mubr.f32.gmra.mxu0 %v395
    %v472 = vpop.f32.mrf.mxu0
    %v473 = vadd.f32 0.0, %v472
    %v474 = vpop.f32.mrf.mxu0
    %475 = vmatprep.mubr.f32.mxu0 0.0
    %476 = vmatmul.mubr.f32.gmra.mxu0 %v398
    %v477 = vpop.f32.mrf.mxu0
    %v478 = vadd.f32 0.0, %v477
    %v479 = vpop.f32.mrf.mxu0
    %480 = vmatprep.mubr.f32.mxu0 0.0
    %481 = vmatmul.mubr.f32.gmra.mxu0 %v401
    %v482 = vpop.f32.mrf.mxu0
    %v483 = vadd.f32 0.0, %v482
    %v484 = vpop.f32.mrf.mxu0
    %485 = vmatprep.mubr.f32.mxu0 0.0
    %486 = vmatmul.mubr.f32.gmra.mxu0 %v404
    %v487 = vpop.f32.mrf.mxu0
    %v488 = vadd.f32 0.0, %v487
    %v489 = vpop.f32.mrf.mxu0
    %490 = vdwg.mxu0
    %vm491 = vcmp.gt.f32.partialorder %v473, 0.0
    %vm492 = vcmp.gt.f32.partialorder %v478, 0.0
    %vm493 = vcmp.gt.f32.partialorder %v483, 0.0
    %vm494 = vcmp.gt.f32.partialorder %v488, 0.0
    %v495 = vmul.f32 %v473, 1.442695
    %v496 = vpow.pop %v495
    %v497 = vmul.f32 %v478, 1.442695
    %v498 = vpow.pop %v497
    %v499 = vmul.f32 %v483, 1.442695
    %v500 = vpow.pop %v499
    %v501 = vmul.f32 %v488, 1.442695
    %v502 = vpow.pop %v501
    %v503 = vsub.f32 %v496, 1.0
    %v504 = vsub.f32 %v498, 1.0
    %v505 = vsub.f32 %v500, 1.0
    %v506 = vsub.f32 %v502, 1.0
    %v507 = vsel %vm491, %v473, %v503
    %v508 = vsel %vm492, %v478, %v504
    %v509 = vsel %vm493, %v483, %v505
    %v510 = vsel %vm494, %v488, %v506
    %511 = vst.msk [vmem:[#allocation2] sm:$0xff] %vm349, %v507
    %512 = vst.msk [vmem:[#allocation2 + $0x8] sm:$0xff] %vm349, %v508
    %513 = vst.msk [vmem:[#allocation2 + $0x10] sm:$0xff] %vm349, %v509
    %514 = vst.msk [vmem:[#allocation2 + $0x18] sm:$0xff] %vm349, %v510
    %515 = vset.pattern.permute.xlu0 1
    %516 = vperm.xlu0 %515, %v209
    %v517 = vpop.permute.xlu0 %516
    %519 = vset.pattern.permute.xlu0 1
    %520 = vperm.xlu0 %519, %v214
    %v521 = vpop.permute.xlu0 %520
    %523 = vset.pattern.permute.xlu0 1
    %524 = vperm.xlu0 %523, %v219
    %v525 = vpop.permute.xlu0 %524
    %527 = vset.pattern.permute.xlu0 1
    %528 = vperm.xlu0 %527, %v224
    %v529 = vpop.permute.xlu0 %528
    %v531 = vlaneseq
    %v532 = vshrl.u32 %v531, 7
    %v533 = vsub.s32 1, %v532
    %v534 = vrot.slane %v298, %v533
    %v535 = vadd.f32 %v517, %v534
    %v536 = vadd.f32 %v521, %v534
    %v537 = vadd.f32 %v525, %v534
    %v538 = vadd.f32 %v529, %v534
    %vm539 = vcmp.gt.f32.partialorder %v535, 0.0
    %vm540 = vcmp.gt.f32.partialorder %v536, 0.0
    %vm541 = vcmp.gt.f32.partialorder %v537, 0.0
    %vm542 = vcmp.gt.f32.partialorder %v538, 0.0
    %v543 = vmul.f32 %v535, 0.2
    %v544 = vmul.f32 %v536, 0.2
    %v545 = vmul.f32 %v537, 0.2
    %v546 = vmul.f32 %v538, 0.2
    %v547 = vsel %vm539, %v535, %v543
    %v548 = vsel %vm540, %v536, %v544
    %v549 = vsel %vm541, %v537, %v545
    %v550 = vsel %vm542, %v538, %v546
    %v551 = vadd.f32 %v547, %v301
    %v552 = vadd.f32 %v548, %v302
    %v553 = vadd.f32 %v549, %v303
    %v554 = vadd.f32 %v550, %v304
    %v555 = vsel %vm349, %v551, -inf
    %556 = vmax.xlane.f32.xlu0 %v555
    %v557 = vpop.xlane.xlu0 %556
    %v558 = vsel %vm349, %v552, -inf
    %559 = vmax.xlane.f32.xlu0 %v558
    %v560 = vpop.xlane.xlu0 %559
    %v561 = vsel %vm349, %v553, -inf
    %562 = vmax.xlane.f32.xlu0 %v561
    %v563 = vpop.xlane.xlu0 %562
    %v564 = vsel %vm349, %v554, -inf
    %565 = vmax.xlane.f32.xlu0 %v564
    %v566 = vpop.xlane.xlu0 %565
    %v567 = vsub.f32 %v551, %v557
    %v568 = vsub.f32 %v552, %v560
    %v569 = vsub.f32 %v553, %v563
    %v570 = vsub.f32 %v554, %v566
    %v571 = vmul.f32 %v567, 1.442695
    %v572 = vpow.pop %v571
    %v573 = vmul.f32 %v568, 1.442695
    %v574 = vpow.pop %v573
    %v575 = vmul.f32 %v569, 1.442695
    %v576 = vpow.pop %v575
    %v577 = vmul.f32 %v570, 1.442695
    %v578 = vpow.pop %v577
    %v579 = vsel %vm349, %v572, 0.0
    %580 = vadd.xlane.f32.xlu0 %v579
    %v581 = vpop.xlane.xlu0 %580
    %v582 = vsel %vm349, %v574, 0.0
    %583 = vadd.xlane.f32.xlu0 %v582
    %v584 = vpop.xlane.xlu0 %583
    %v585 = vsel %vm349, %v576, 0.0
    %586 = vadd.xlane.f32.xlu0 %v585
    %v587 = vpop.xlane.xlu0 %586
    %v588 = vsel %vm349, %v578, 0.0
    %589 = vadd.xlane.f32.xlu0 %v588
    %v590 = vpop.xlane.xlu0 %589
    %v591 = vrcp.pop %v581
    %v592 = vmul.f32 %v572, %v591
    %v593 = vrcp.pop %v584
    %v594 = vmul.f32 %v574, %v593
    %v595 = vrcp.pop %v587
    %v596 = vmul.f32 %v576, %v595
    %v597 = vrcp.pop %v590
    %v598 = vmul.f32 %v578, %v597
    %599 = vrot.lane.b32.xlu0 %v107, 96
    %v600 = vpop.permute.xlu0 %599
    %601 = vrot.lane.b32.xlu0 %v112, 96
    %v602 = vpop.permute.xlu0 %601
    %603 = vrot.lane.b32.xlu0 %v117, 96
    %v604 = vpop.permute.xlu0 %603
    %605 = vrot.lane.b32.xlu0 %v122, 96
    %v606 = vpop.permute.xlu0 %605
    %v612 = vsel %vm349, %v592, 0
    %v615 = vsel %vm349, %v594, 0
    %v618 = vsel %vm349, %v596, 0
    %v621 = vsel %vm349, %v598, 0
    %623 = vmatprep.subr.mxu0 0.0
    %624 = vmatpush1.msra.mxu0 0.0
    %625 = vmatprep.subr.mxu0 0.0
    %626 = vmatpush1.msra.mxu0 0.0
    %627 = vmatprep.subr.mxu0 0.0
    %628 = vmatpush1.msra.mxu0 0.0
    %629 = vmatprep.subr.mxu0 0.0
    %630 = vmatpush1.msra.mxu0 0.0
    %631 = vmatprep.subr.mxu0 0.0
    %632 = vmatpush1.msra.mxu0 0.0
    %633 = vmatprep.subr.mxu0 0.0
    %634 = vmatpush1.msra.mxu0 0.0
    %635 = vmatprep.subr.mxu0 0.0
    %636 = vmatpush1.msra.mxu0 0.0
    %637 = vmatprep.subr.mxu0 0.0
    %638 = vmatpush1.msra.mxu0 0.0
    %639 = vmatprep.subr.mxu0 0.0
    %640 = vmatpush1.msra.mxu0 0.0
    %641 = vmatprep.subr.mxu0 0.0
    %642 = vmatpush1.msra.mxu0 0.0
    %643 = vmatprep.subr.mxu0 0.0
    %644 = vmatpush1.msra.mxu0 0.0
    %645 = vmatprep.subr.mxu0 0.0
    %646 = vmatpush1.msra.mxu0 0.0
    %647 = vmatprep.subr.mxu0 0.0
    %648 = vmatpush1.msra.mxu0 %v606
    %649 = vmatprep.subr.mxu0 0.0
    %650 = vmatpush1.msra.mxu0 %v604
    %651 = vmatprep.subr.mxu0 0.0
    %652 = vmatpush1.msra.mxu0 %v602
    %653 = vmatprep.subr.mxu0 0.0
    %654 = vmatpush1.msra.mxu0 %v600
    %655 = vmatprep.subr.mxu0 0.0
    %656 = vmatpush2.msra.mxu0 0.0
    %657 = vmatprep.subr.mxu0 0.0
    %658 = vmatpush2.msra.mxu0 0.0
    %659 = vmatprep.subr.mxu0 0.0
    %660 = vmatpush2.msra.mxu0 0.0
    %661 = vmatprep.subr.mxu0 0.0
    %662 = vmatpush2.msra.mxu0 0.0
    %663 = vmatprep.subr.mxu0 0.0
    %664 = vmatpush2.msra.mxu0 0.0
    %665 = vmatprep.subr.mxu0 0.0
    %666 = vmatpush2.msra.mxu0 0.0
    %667 = vmatprep.subr.mxu0 0.0
    %668 = vmatpush2.msra.mxu0 0.0
    %669 = vmatprep.subr.mxu0 0.0
    %670 = vmatpush2.msra.mxu0 0.0
    %671 = vmatprep.subr.mxu0 0.0
    %672 = vmatpush2.msra.mxu0 0.0
    %673 = vmatprep.subr.mxu0 0.0
    %674 = vmatpush2.msra.mxu0 0.0
    %675 = vmatprep.subr.mxu0 0.0
    %676 = vmatpush2.msra.mxu0 0.0
    %677 = vmatprep.subr.mxu0 0.0
    %678 = vmatpush2.msra.mxu0 0.0
    %679 = vmatprep.subr.mxu0 0.0
    %680 = vmatpush2.msra.mxu0 0.0
    %681 = vmatprep.subr.mxu0 0.0
    %682 = vmatpush2.msra.mxu0 0.0
    %683 = vmatprep.subr.mxu0 0.0
    %684 = vmatpush2.msra.mxu0 0.0
    %685 = vmatprep.subr.mxu0 0.0
    %686 = vmatpush2.msra.mxu0 0.0
    %687 = vmatprep.mubr.f32.mxu0 0.0
    %688 = vmatmul.mubr.f32.gmra.mxu0 %v612
    %v689 = vpop.f32.mrf.mxu0
    %v690 = vadd.f32 0.0, %v689
    %v691 = vpop.f32.mrf.mxu0
    %692 = vmatprep.mubr.f32.mxu0 0.0
    %693 = vmatmul.mubr.f32.gmra.mxu0 %v615
    %v694 = vpop.f32.mrf.mxu0
    %v695 = vadd.f32 0.0, %v694
    %v696 = vpop.f32.mrf.mxu0
    %697 = vmatprep.mubr.f32.mxu0 0.0
    %698 = vmatmul.mubr.f32.gmra.mxu0 %v618
    %v699 = vpop.f32.mrf.mxu0
    %v700 = vadd.f32 0.0, %v699
    %v701 = vpop.f32.mrf.mxu0
    %702 = vmatprep.mubr.f32.mxu0 0.0
    %703 = vmatmul.mubr.f32.gmra.mxu0 %v621
    %v704 = vpop.f32.mrf.mxu0
    %v705 = vadd.f32 0.0, %v704
    %v706 = vpop.f32.mrf.mxu0
    %707 = vdwg.mxu0
    %vm708 = vcmp.gt.f32.partialorder %v690, 0.0
    %vm709 = vcmp.gt.f32.partialorder %v695, 0.0
    %vm710 = vcmp.gt.f32.partialorder %v700, 0.0
    %vm711 = vcmp.gt.f32.partialorder %v705, 0.0
    %v712 = vmul.f32 %v690, 1.442695
    %v713 = vpow.pop %v712
    %v714 = vmul.f32 %v695, 1.442695
    %v715 = vpow.pop %v714
    %v716 = vmul.f32 %v700, 1.442695
    %v717 = vpow.pop %v716
    %v718 = vmul.f32 %v705, 1.442695
    %v719 = vpow.pop %v718
    %v720 = vsub.f32 %v713, 1.0
    %v721 = vsub.f32 %v715, 1.0
    %v722 = vsub.f32 %v717, 1.0
    %v723 = vsub.f32 %v719, 1.0
    %v724 = vsel %vm708, %v690, %v720
    %v725 = vsel %vm709, %v695, %v721
    %v726 = vsel %vm710, %v700, %v722
    %v727 = vsel %vm711, %v705, %v723
    %732 = vrot.lane.b32.xlu0 %v724, 32
    %v733 = vpop.permute.xlu0 %732
    %734 = vrot.lane.b32.xlu0 %v725, 32
    %v735 = vpop.permute.xlu0 %734
    %736 = vrot.lane.b32.xlu0 %v726, 32
    %v737 = vpop.permute.xlu0 %736
    %738 = vrot.lane.b32.xlu0 %v727, 32
    %v739 = vpop.permute.xlu0 %738
    %vm744 = vcmask 523520
    %745 = vst.msk [vmem:[#allocation2] sm:$0xff] %vm744, %v733
    %746 = vst.msk [vmem:[#allocation2 + $0x8] sm:$0xff] %vm744, %v735
    %747 = vst.msk [vmem:[#allocation2 + $0x10] sm:$0xff] %vm744, %v737
    %748 = vst.msk [vmem:[#allocation2 + $0x18] sm:$0xff] %vm744, %v739
    // Predicated region
    $region22: #{tpu_custom_call.1} parent=1 // pred_check
      _
    $region23: #{tpu_custom_call.1} parent=1 // pred_check_branch
      %750 = sbr.rel (0) target = $region25
    $region24: #{tpu_custom_call.1} parent=1 // pred_region
      %s752 = ssub.s32 512, 512
      %753 = vsyncadd [#allocation3], %s752
      %s754 = sshll.u32 [#allocation2], 4
      %s755 = int_to_ptr.vmem [resolvable:$true] %s754
      %760 = dma.vmem_to_hbm [thread:$0]  %s755, 512, %s5, [#allocation3], 128, 128, 8
    $region25: #{tpu_custom_call.1} parent=1 // pred_fallthru
      _
    // Predicated region
    $region26: #{tpu_custom_call.1} parent=1 // pred_check
      _
    $region27: #{tpu_custom_call.1} parent=1 // pred_check_branch
      %762 = sbr.rel (0) target = $region29
    $region28: #{tpu_custom_call.1} parent=1 // pred_region
      %763 = dma.done [#allocation3], 512
    $region29: #{tpu_custom_call.1} parent=1 // pred_fallthru
      _
    %764 = vsyncpa [#allocation3], 1

</llo_original>
